<compile_context>
chip_gen: v6e
topology: v6e:2x2x1
jax: 0.10.0
libtpu: 0.0.40
codegen_flags: <defaults>
</compile_context>

<pallas_src>
import functools

import jax
import jax.numpy as jnp
from jax import lax
from jax.experimental import pallas as pl
from jax.experimental.pallas import tpu as pltpu


def _make_kernel(tap_list, tile_lanes):
    """tap_list: static list of (phase_index, flat_offset) per conv tap."""

    def kernel(x_ref, w_ref, scale_ref, shift_ref, o_ref):
        # x_ref:     (s2, C_in, band_len)   f32  one row-band (phase-decomposed,
        #                                        zero-padded); spatial grid on LANES.
        # w_ref:     (C_out, n_taps*C_in)   bf16 raw conv weights, taps stacked on K.
        # scale_ref: (C_out, 1)             f32  gamma * rsqrt(var + eps)
        # shift_ref: (C_out, 1)             f32  beta - mean * scale
        # o_ref:     (C_out, tile_lanes)         lane-dense transposed output tile.
        x = jnp.maximum(x_ref[...], 0.0)                    # ReLU once, f32 (VPU)
        # Stack all KH*KW shifted views into one (K, tile_lanes) RHS; cast once.
        rhs = jnp.concatenate(
            [x[ph, :, off:off + tile_lanes] for ph, off in tap_list],
            axis=0).astype(jnp.bfloat16)
        # Single MXU contraction, f32 accumulate (MRB-accumulated on v7x).
        acc = jnp.dot(w_ref[...], rhs, preferred_element_type=jnp.float32)
        # Eval-mode BatchNorm in f32 on the accumulator (weights NOT scale-folded).
        o_ref[...] = (acc * scale_ref[...] + shift_ref[...]).astype(o_ref.dtype)

    return kernel


def _block_vmem_bytes(shape):
    """Conservative VMEM bytes of a block, padded to the 32-bit (8,128) vreg tile."""
    s = (1, 1) + tuple(int(d) for d in shape)
    lead = 1
    for d in s[:-2]:
        lead *= d
    return lead * (-(-s[-2] // 8) * 8) * (-(-s[-1] // 128) * 128) * 4


@functools.partial(
    jax.jit,
    static_argnames=("kernel_size", "stride", "padding", "eps", "tile_rows",
                     "out_dtype"))
def relu_conv_bn(x, conv_w, bn_gamma, bn_beta, bn_mean, bn_var, *,
                 kernel_size, stride, padding, eps=1e-5, tile_rows=8,
                 out_dtype=jnp.float32):
    """x: (N, C_in, H, W) f32; conv_w: (C_out, C_in, KH, KW) f32. Returns NCHW."""
    n, c_in, h, w = x.shape
    c_out = conv_w.shape[0]
    kh = kw = kernel_size
    s = stride
    p = padding
    h_out = (h + 2 * p - kh) // s + 1
    w_out = (w + 2 * p - kw) // s + 1

    # ---- activation prep: zero-pad, space-to-phase, flatten spatial onto lanes.
    # (relu(0) == 0 so padding before the in-kernel ReLU is exact.)
    h_pad, w_pad = h + 2 * p, w + 2 * p
    h_ph = -(-h_pad // s)               # phase-grid rows
    w_ph = -(-w_pad // s)               # phase-grid row pitch (lanes per output row)
    s2 = s * s
    x_sp = jnp.pad(
        x, ((0, 0), (0, 0),
            (p, p + h_ph * s - h_pad),
            (p, p + w_ph * s - w_pad)))
    # (N,C,Hph,s,Wph,s) -> (N,s,s,C,Hph,Wph) -> (N,s2,C,Hph*Wph): channels on sublanes,
    # flattened spatial on lanes (lane-dense; no NCHW->NHWC transpose needed).
    x_ph = x_sp.reshape(n, c_in, h_ph, s, w_ph, s).transpose(0, 3, 5, 1, 2, 4)
    x_flat = x_ph.reshape(n, s2, c_in, h_ph * w_ph)

    # ---- spatial row tiling (bounds the per-step VMEM block; extra parallel work).
    tile_rows = max(1, min(tile_rows, h_out))
    n_tiles = -(-h_out // tile_rows)
    tile_lanes = tile_rows * w_ph
    halo = ((kh - 1) // s) * w_ph + ((kw - 1) // s)
    band_len = tile_lanes + halo
    l_need = (n_tiles - 1) * tile_lanes + band_len
    if l_need > h_ph * w_ph:
        x_flat = jnp.pad(
            x_flat, ((0, 0), (0, 0), (0, 0), (0, l_need - h_ph * w_ph)))
    # Row-bands with halo duplicated once in HBM (only (kh-1)//s rows per tile).
    x_bands = jnp.stack(
        [x_flat[..., t * tile_lanes: t * tile_lanes + band_len]
         for t in range(n_tiles)], axis=1)              # (N, T, s2, C_in, band)
    x_bands = x_bands.reshape(n * n_tiles, s2, c_in, band_len)

    # ---- weights: taps stacked along K, raw (un-scaled) bf16; BN params stay f32.
    n_taps = kh * kw
    k_total = n_taps * c_in
    w_stacked = conv_w.transpose(0, 2, 3, 1).reshape(c_out, k_total)
    w_stacked = w_stacked.astype(jnp.bfloat16)
    inv_std = lax.rsqrt(bn_var + eps)
    scale = (bn_gamma * inv_std).astype(jnp.float32).reshape(c_out, 1)
    shift = (bn_beta - bn_mean * bn_gamma * inv_std).astype(
        jnp.float32).reshape(c_out, 1)

    # Static tap table: phase index + flat offset of each tap within a band.
    tap_list = [((th % s) * s + (tw % s), (th // s) * w_ph + (tw // s))
                for th in range(kh) for tw in range(kw)]
    kernel = _make_kernel(tap_list, tile_lanes)

    n_steps = n * n_tiles
    flops = 2 * n_steps * c_out * k_total * tile_lanes
    bytes_accessed = (x_bands.size * 4 + w_stacked.size * 2 + 2 * c_out * 4
                      + n_steps * c_out * tile_lanes
                      * jnp.dtype(out_dtype).itemsize)

    # VMEM budget derived from the actual block sizes (double-buffered I/O blocks +
    # in-kernel temporaries), with 2x margin and an 8 MiB floor; capped at 64 MiB (v7x).
    vmem_need = (
        2 * _block_vmem_bytes((s2, c_in, band_len))     # x band (pipelined)
        + 2 * _block_vmem_bytes((c_out, tile_lanes))    # out block (pipelined)
        + _block_vmem_bytes((c_out, k_total))           # weights
        + 2 * _block_vmem_bytes((c_out, 1))             # scale, shift
        + _block_vmem_bytes((s2, c_in, band_len))       # ReLU'd copy
        + _block_vmem_bytes((k_total, tile_lanes))      # stacked RHS
        + _block_vmem_bytes((c_out, tile_lanes)))       # f32 accumulator
    vmem_limit = int(min(64 * 2 ** 20, max(8 * 2 ** 20, 2 * vmem_need)))

    out_t = pl.pallas_call(
        kernel,
        out_shape=jax.ShapeDtypeStruct((n_steps, c_out, tile_lanes), out_dtype),
        grid=(n_steps,),
        in_specs=[
            pl.BlockSpec((None, s2, c_in, band_len), lambda i: (i, 0, 0, 0)),
            pl.BlockSpec((c_out, k_total), lambda i: (0, 0)),
            pl.BlockSpec((c_out, 1), lambda i: (0, 0)),
            pl.BlockSpec((c_out, 1), lambda i: (0, 0)),
        ],
        out_specs=pl.BlockSpec((None, c_out, tile_lanes), lambda i: (i, 0, 0)),
        compiler_params=pltpu.CompilerParams(
            dimension_semantics=("parallel",),
            vmem_limit_bytes=vmem_limit),
        cost_estimate=pl.CostEstimate(flops=flops, transcendentals=0,
                                      bytes_accessed=bytes_accessed),
    )(x_bands, w_stacked, scale, shift)

    # (N*T, C_out, tile_rows*w_ph) -> (N, C_out, T*tile_rows, w_ph); discard the
    # wrap-around columns (>= w_out) and padded rows (>= h_out).
    out = (out_t.reshape(n, n_tiles, c_out, tile_rows, w_ph)
                .transpose(0, 2, 1, 3, 4)
                .reshape(n, c_out, n_tiles * tile_rows, w_ph))
    return out[:, :, :h_out, :w_out]


def _reference(x, conv_w, bn_gamma, bn_beta, bn_mean, bn_var,
               *, kernel_size, stride, padding, eps=1e-5):
    y = lax.conv_general_dilated(
        jnp.maximum(x, 0.0), conv_w,
        window_strides=(stride, stride),
        padding=((padding, padding), (padding, padding)),
        dimension_numbers=("NCHW", "OIHW", "NCHW"))
    scale = (bn_gamma * lax.rsqrt(bn_var + eps)).reshape(1, -1, 1, 1)
    shift = (bn_beta - bn_mean * bn_gamma * lax.rsqrt(bn_var + eps)).reshape(
        1, -1, 1, 1)
    return y * scale + shift


if __name__ == "__main__":
    # ReLUConvBN(C_in=4, C_out=8, kernel_size=3, stride=1, padding=1, affine=True)
    N, C_IN, H, W = 2, 4, 16, 16
    C_OUT, KS, STRIDE, PAD = 8, 3, 1, 1

    key = jax.random.PRNGKey(0)
    kx, kw_, kg, kb, km, kv = jax.random.split(key, 6)

    x = jax.random.normal(kx, (N, C_IN, H, W), dtype=jnp.float32)
    conv_w = jax.random.normal(kw_, (C_OUT, C_IN, KS, KS), dtype=jnp.float32) * 0.1
    # BatchNorm2d parameters / running stats (eval-mode semantics).
    bn_gamma = 1.0 + 0.1 * jax.random.normal(kg, (C_OUT,), dtype=jnp.float32)
    bn_beta = 0.1 * jax.random.normal(kb, (C_OUT,), dtype=jnp.float32)
    bn_mean = 0.1 * jax.random.normal(km, (C_OUT,), dtype=jnp.float32)
    bn_var = jnp.abs(1.0 + 0.1 * jax.random.normal(kv, (C_OUT,), dtype=jnp.float32))

    out = relu_conv_bn(x, conv_w, bn_gamma, bn_beta, bn_mean, bn_var,
                       kernel_size=KS, stride=STRIDE, padding=PAD)
    out = jax.block_until_ready(out)

    ref = _reference(x, conv_w, bn_gamma, bn_beta, bn_mean, bn_var,
                     kernel_size=KS, stride=STRIDE, padding=PAD)
    assert out.shape == (N, C_OUT, H, W), out.shape
    # bf16 MXU operands vs f32 reference -> relaxed tolerance.
    max_err = float(jnp.max(jnp.abs(out - ref)))
    assert jnp.allclose(out, ref, atol=5e-2, rtol=5e-2), \
        f"mismatch vs reference, max abs err {max_err}"

    print("KERNEL_OK")
</pallas_src>

<mosaic_0001>
module attributes {stable_mosaic.version = 11 : i64} {
  func.func @kernel(%arg0: i32, %arg1: memref<1x1x4x182xf32, #tpu.memory_space<vmem>>, %arg2: memref<8x36xbf16, #tpu.memory_space<vmem>>, %arg3: memref<8x1xf32, #tpu.memory_space<vmem>>, %arg4: memref<8x1xf32, #tpu.memory_space<vmem>>, %arg5: memref<1x8x144xf32, #tpu.memory_space<vmem>>) attributes {dimension_semantics = [#tpu.dimension_semantics<parallel>], iteration_bounds = array<i64: 4>, scalar_prefetch = 0 : i64, scratch_operands = 0 : i64, tpu.core_type = #tpu.core_type<tc>, window_params = [{transform_indices = @transform_0, window_bounds = array<i64: 1, 1, 4, 182>}, {pipeline_mode = #tpu.pipeline_mode<synchronous>, transform_indices = @transform_1, window_bounds = array<i64: 8, 36>}, {pipeline_mode = #tpu.pipeline_mode<synchronous>, transform_indices = @transform_2, window_bounds = array<i64: 8, 1>}, {pipeline_mode = #tpu.pipeline_mode<synchronous>, transform_indices = @transform_3, window_bounds = array<i64: 8, 1>}, {transform_indices = @transform_4, window_bounds = array<i64: 1, 8, 144>}]} {
    %c0 = arith.constant 0 : index
    %c0_0 = arith.constant 0 : index
    %c0_1 = arith.constant 0 : index
    %c0_2 = arith.constant 0 : index
    %0 = vector.load %arg1[%c0, %c0_0, %c0_1, %c0_2] : memref<1x1x4x182xf32, #tpu.memory_space<vmem>>, vector<1x1x4x182xf32>
    %1 = vector.shape_cast %0 : vector<1x1x4x182xf32> to vector<1x4x182xf32>
    %cst = arith.constant 0.000000e+00 : f32
    %2 = vector.broadcast %cst : f32 to vector<1x4x182xf32>
    %3 = arith.maximumf %1, %2 : vector<1x4x182xf32>
    %4 = vector.extract_strided_slice %3 {offsets = [0, 0, 0], sizes = [1, 4, 144], strides = [1, 1, 1]} : vector<1x4x182xf32> to vector<1x4x144xf32>
    %5 = vector.shape_cast %4 : vector<1x4x144xf32> to vector<4x144xf32>
    %6 = vector.extract_strided_slice %3 {offsets = [0, 0, 1], sizes = [1, 4, 144], strides = [1, 1, 1]} : vector<1x4x182xf32> to vector<1x4x144xf32>
    %7 = vector.shape_cast %6 : vector<1x4x144xf32> to vector<4x144xf32>
    %8 = vector.extract_strided_slice %3 {offsets = [0, 0, 2], sizes = [1, 4, 144], strides = [1, 1, 1]} : vector<1x4x182xf32> to vector<1x4x144xf32>
    %9 = vector.shape_cast %8 : vector<1x4x144xf32> to vector<4x144xf32>
    %10 = vector.extract_strided_slice %3 {offsets = [0, 0, 18], sizes = [1, 4, 144], strides = [1, 1, 1]} : vector<1x4x182xf32> to vector<1x4x144xf32>
    %11 = vector.shape_cast %10 : vector<1x4x144xf32> to vector<4x144xf32>
    %12 = vector.extract_strided_slice %3 {offsets = [0, 0, 19], sizes = [1, 4, 144], strides = [1, 1, 1]} : vector<1x4x182xf32> to vector<1x4x144xf32>
    %13 = vector.shape_cast %12 : vector<1x4x144xf32> to vector<4x144xf32>
    %14 = vector.extract_strided_slice %3 {offsets = [0, 0, 20], sizes = [1, 4, 144], strides = [1, 1, 1]} : vector<1x4x182xf32> to vector<1x4x144xf32>
    %15 = vector.shape_cast %14 : vector<1x4x144xf32> to vector<4x144xf32>
    %16 = vector.extract_strided_slice %3 {offsets = [0, 0, 36], sizes = [1, 4, 144], strides = [1, 1, 1]} : vector<1x4x182xf32> to vector<1x4x144xf32>
    %17 = vector.shape_cast %16 : vector<1x4x144xf32> to vector<4x144xf32>
    %18 = vector.extract_strided_slice %3 {offsets = [0, 0, 37], sizes = [1, 4, 144], strides = [1, 1, 1]} : vector<1x4x182xf32> to vector<1x4x144xf32>
    %19 = vector.shape_cast %18 : vector<1x4x144xf32> to vector<4x144xf32>
    %20 = vector.extract_strided_slice %3 {offsets = [0, 0, 38], sizes = [1, 4, 144], strides = [1, 1, 1]} : vector<1x4x182xf32> to vector<1x4x144xf32>
    %21 = vector.shape_cast %20 : vector<1x4x144xf32> to vector<4x144xf32>
    %22 = tpu.concatenate %5, %7, %9, %11, %13, %15, %17, %19, %21 in 0 : vector<4x144xf32>, vector<4x144xf32>, vector<4x144xf32>, vector<4x144xf32>, vector<4x144xf32>, vector<4x144xf32>, vector<4x144xf32>, vector<4x144xf32>, vector<4x144xf32> -> vector<36x144xf32>
    %23 = arith.truncf %22 : vector<36x144xf32> to vector<36x144xbf16>
    %c0_3 = arith.constant 0 : index
    %c0_4 = arith.constant 0 : index
    %24 = vector.load %arg2[%c0_3, %c0_4] : memref<8x36xbf16, #tpu.memory_space<vmem>>, vector<8x36xbf16>
    %cst_5 = arith.constant dense<0.000000e+00> : vector<8x144xf32>
    %25 = tpu.matmul %24, %23, %cst_5 {dimension_numbers = #tpu.dot_dimension_numbers<[1], [0], [0], [1], [0, 0, 1, 1], [], []>} : vector<8x36xbf16>, vector<36x144xbf16>, vector<8x144xf32> -> vector<8x144xf32>
    %c0_6 = arith.constant 0 : index
    %c0_7 = arith.constant 0 : index
    %26 = vector.load %arg3[%c0_6, %c0_7] : memref<8x1xf32, #tpu.memory_space<vmem>>, vector<8x1xf32>
    %27 = vector.broadcast %26 : vector<8x1xf32> to vector<8x144xf32>
    %28 = arith.mulf %25, %27 : vector<8x144xf32>
    %c0_8 = arith.constant 0 : index
    %c0_9 = arith.constant 0 : index
    %29 = vector.load %arg4[%c0_8, %c0_9] : memref<8x1xf32, #tpu.memory_space<vmem>>, vector<8x1xf32>
    %30 = vector.broadcast %29 : vector<8x1xf32> to vector<8x144xf32>
    %31 = arith.addf %28, %30 : vector<8x144xf32>
    %c0_10 = arith.constant 0 : index
    %c0_11 = arith.constant 0 : index
    %c0_12 = arith.constant 0 : index
    %32 = vector.load %arg5[%c0_10, %c0_11, %c0_12] : memref<1x8x144xf32, #tpu.memory_space<vmem>>, vector<1x8x144xf32>
    %33 = vector.shape_cast %32 : vector<1x8x144xf32> to vector<8x144xf32>
    %34 = vector.shape_cast %31 : vector<8x144xf32> to vector<1x8x144xf32>
    tpu.vector_store %arg5[%c0_10, %c0_11, %c0_12], %34 {strides = array<i32>} : memref<1x8x144xf32, #tpu.memory_space<vmem>>, vector<1x8x144xf32>,
    return
  }
  func.func @transform_0(%arg0: i32) -> (i32, i32, i32, i32) {
    %c0_i32 = arith.constant 0 : i32
    %c0_i32_0 = arith.constant 0 : i32
    %c0_i32_1 = arith.constant 0 : i32
    %c0_i32_2 = arith.constant 0 : i32
    return %arg0, %c0_i32, %c0_i32_0, %c0_i32_1 : i32, i32, i32, i32
  }
  func.func @transform_1(%arg0: i32) -> (i32, i32) {
    %c0_i32 = arith.constant 0 : i32
    %c0_i32_0 = arith.constant 0 : i32
    %c0_i32_1 = arith.constant 0 : i32
    return %c0_i32, %c0_i32_0 : i32, i32
  }
  func.func @transform_2(%arg0: i32) -> (i32, i32) {
    %c0_i32 = arith.constant 0 : i32
    %c0_i32_0 = arith.constant 0 : i32
    %c0_i32_1 = arith.constant 0 : i32
    return %c0_i32, %c0_i32_0 : i32, i32
  }
  func.func @transform_3(%arg0: i32) -> (i32, i32) {
    %c0_i32 = arith.constant 0 : i32
    %c0_i32_0 = arith.constant 0 : i32
    %c0_i32_1 = arith.constant 0 : i32
    return %c0_i32, %c0_i32_0 : i32, i32
  }
  func.func @transform_4(%arg0: i32) -> (i32, i32, i32) {
    %c0_i32 = arith.constant 0 : i32
    %c0_i32_0 = arith.constant 0 : i32
    %c0_i32_1 = arith.constant 0 : i32
    return %arg0, %c0_i32, %c0_i32_0 : i32, i32, i32
  }
}

</mosaic_0001>

<llo_original>
// kernel: relu_conv_bn.1
$region0: #{relu_conv_bn.1}
  #allocation0 [shape = 'u32[]', space=smem, size = 0x4, offset = 0x4, fixed_abs, tag = 'smem constant byte address 0x4 - core index']
  #allocation1 [shape = 'u32[144,128]{1,0:T(1,128)}', space=vmem, size = 0x12000, scoped, tag = 'internal scratch']
  %s0 = inlined_call_operand.vmem [shape: f32[4,1,4,182], index: 0, kind: input, shape index: {}]
  %s1 = inlined_call_operand.vmem [shape: bf16[8,36], index: 1, kind: input, shape index: {}]
  %s2 = inlined_call_operand.vmem [shape: f32[8,1], index: 2, kind: input, shape index: {}]
  %s3 = inlined_call_operand.vmem [shape: f32[8,1], index: 3, kind: input, shape index: {}]
  %s4 = inlined_call_operand.vmem [shape: f32[4,8,144], index: 4, kind: output, shape index: {}]
  %s5 = sld [smem:[#allocation0]]
  $region49: #{relu_conv_bn.1} parent=0
    _
  %s7 = ssub.s32 1, %s5
  %s8 = scalar_select 0, %s7, %s5
  loop: start=0, step=1, limit=6
  $region2: #{relu_conv_bn.1} parent=0 // loop_pre_header
    _
  $region3: #{relu_conv_bn.1} parent=0 // loop_header
    %s10 = sphi 0, %s14
    %p11 = scmp.ge.s32.totalorder %s10, 6
    %s20 = sphi 0, %s22
    %s23 = sphi 0, %s20
    %s24 = sphi 0, %s23
    %s40 = sphi 0, %s24
    %s44 = sphi 0, %s44
    %s46 = sphi 0, %s44
    %s47 = sphi 0, %s46
    %s61 = sphi 0, %s47
    %s65 = sphi 0, %s65
    %s67 = sphi 0, %s65
    %s68 = sphi 0, %s67
    %s82 = sphi 0, %s68
    %s86 = sphi 0, %s86
    %s88 = sphi 0, %s86
    %s89 = sphi 0, %s88
    %s103 = sphi 0, %s89
    %s109 = sphi 0, %s111
    %s112 = sphi 0, %s109
    %s113 = sphi 0, %s112
    %s129 = sphi 0, %s113
  $region4: #{relu_conv_bn.1} parent=0 // loop_header_branch
    %13 = sbr.rel (%p11) target = $region8
  $region5: #{relu_conv_bn.1} parent=0 // loop_body
    %s15 = ssub.s32 %s10, 1
    %s16 = ssub.s32 %s10, 2
    %s17 = sadd.s32 %s10, 1
    %s18 = ssub.s32 %s10, %s17
    %p19 = scmp.eq.s32.totalorder %s18, 0
    %s21 = sadd.s32 %s20, 1
    %s22 = scalar_select %p19, %s20, %s21
    %p25 = pneg %p19
    %p26 = scmp.eq.s32.totalorder %s10, 3
    %p27 = por %p25, %p26
    %p28 = scmp.ne.s32.totalorder %s20, %s23
    %p29 = scmp.eq.s32.totalorder %s10, 0
    %p30 = por %p28, %p29
    %p31 = scmp.ne.s32.totalorder %s20, %s23
    %p32 = scmp.eq.s32.totalorder %s15, 3
    %p33 = por %p31, %p32
    %p34 = scmp.ne.s32.totalorder %s23, %s24
    %p35 = scmp.eq.s32.totalorder %s15, 0
    %p36 = por %p34, %p35
    %p37 = scmp.ne.s32.totalorder %s23, %s24
    %p38 = scmp.eq.s32.totalorder %s16, 3
    %p39 = por %p37, %p38
    %p41 = scmp.ne.s32.totalorder %s24, %s40
    %p42 = scmp.eq.s32.totalorder %s16, 0
    %p43 = por %p41, %p42
    %s45 = sadd.s32 %s44, 1
    %p48 = scmp.eq.s32.totalorder %s10, 3
    %p49 = scmp.ne.s32.totalorder %s44, %s46
    %p50 = scmp.eq.s32.totalorder %s10, 0
    %p51 = por %p49, %p50
    %p52 = scmp.ne.s32.totalorder %s44, %s46
    %p53 = scmp.eq.s32.totalorder %s15, 3
    %p54 = por %p52, %p53
    %p55 = scmp.ne.s32.totalorder %s46, %s47
    %p56 = scmp.eq.s32.totalorder %s15, 0
    %p57 = por %p55, %p56
    %p58 = scmp.ne.s32.totalorder %s46, %s47
    %p59 = scmp.eq.s32.totalorder %s16, 3
    %p60 = por %p58, %p59
    %p62 = scmp.ne.s32.totalorder %s47, %s61
    %p63 = scmp.eq.s32.totalorder %s16, 0
    %p64 = por %p62, %p63
    %s66 = sadd.s32 %s65, 1
    %p69 = scmp.eq.s32.totalorder %s10, 3
    %p70 = scmp.ne.s32.totalorder %s65, %s67
    %p71 = scmp.eq.s32.totalorder %s10, 0
    %p72 = por %p70, %p71
    %p73 = scmp.ne.s32.totalorder %s65, %s67
    %p74 = scmp.eq.s32.totalorder %s15, 3
    %p75 = por %p73, %p74
    %p76 = scmp.ne.s32.totalorder %s67, %s68
    %p77 = scmp.eq.s32.totalorder %s15, 0
    %p78 = por %p76, %p77
    %p79 = scmp.ne.s32.totalorder %s67, %s68
    %p80 = scmp.eq.s32.totalorder %s16, 3
    %p81 = por %p79, %p80
    %p83 = scmp.ne.s32.totalorder %s68, %s82
    %p84 = scmp.eq.s32.totalorder %s16, 0
    %p85 = por %p83, %p84
    %s87 = sadd.s32 %s86, 1
    %p90 = scmp.eq.s32.totalorder %s10, 3
    %p91 = scmp.ne.s32.totalorder %s86, %s88
    %p92 = scmp.eq.s32.totalorder %s10, 0
    %p93 = por %p91, %p92
    %p94 = scmp.ne.s32.totalorder %s86, %s88
    %p95 = scmp.eq.s32.totalorder %s15, 3
    %p96 = por %p94, %p95
    %p97 = scmp.ne.s32.totalorder %s88, %s89
    %p98 = scmp.eq.s32.totalorder %s15, 0
    %p99 = por %p97, %p98
    %p100 = scmp.ne.s32.totalorder %s88, %s89
    %p101 = scmp.eq.s32.totalorder %s16, 3
    %p102 = por %p100, %p101
    %p104 = scmp.ne.s32.totalorder %s89, %s103
    %p105 = scmp.eq.s32.totalorder %s16, 0
    %p106 = por %p104, %p105
    %s107 = ssub.s32 %s10, %s17
    %p108 = scmp.eq.s32.totalorder %s107, 0
    %s110 = sadd.s32 %s109, 1
    %s111 = scalar_select %p108, %s109, %s110
    %p114 = pneg %p108
    %p115 = scmp.eq.s32.totalorder %s10, 3
    %p116 = por %p114, %p115
    %p117 = scmp.ne.s32.totalorder %s109, %s112
    %p118 = scmp.eq.s32.totalorder %s10, 0
    %p119 = por %p117, %p118
    %p120 = scmp.ne.s32.totalorder %s109, %s112
    %p121 = scmp.eq.s32.totalorder %s15, 3
    %p122 = por %p120, %p121
    %p123 = scmp.ne.s32.totalorder %s112, %s113
    %p124 = scmp.eq.s32.totalorder %s15, 0
    %p125 = por %p123, %p124
    %p126 = scmp.ne.s32.totalorder %s112, %s113
    %p127 = scmp.eq.s32.totalorder %s16, 3
    %p128 = por %p126, %p127
    %p130 = scmp.ne.s32.totalorder %s113, %s129
    %p131 = scmp.eq.s32.totalorder %s16, 0
    %p132 = por %p130, %p131
    %p133 = scmp.le.s32.totalorder 1, %s10
    %p134 = scmp.lt.s32.totalorder %s10, 5
    %p135 = pnand %p133, %p134
    %p136 = pneg %p135
    // Predicated region
    $region9: #{relu_conv_bn.1} parent=5 // pred_check
      _
    $region10: #{relu_conv_bn.1} parent=5 // pred_check_branch
      %138 = sbr.rel (%p135) target = $region12
    $region11: #{relu_conv_bn.1} parent=5 // pred_region
      %s139 = ssub.s32 %s10, 1
      // Predicated region
      $region13: #{relu_conv_bn.1} parent=11 // pred_check
        %p140 = pneg %p57
      $region14: #{relu_conv_bn.1} parent=11 // pred_check_branch
        %142 = sbr.rel (%p140) target = $region16
      $region15: #{relu_conv_bn.1} parent=11 // pred_region
        _
      $region16: #{relu_conv_bn.1} parent=11 // pred_fallthru
        _
      // Predicated region
      $region17: #{relu_conv_bn.1} parent=11 // pred_check
        %p143 = pneg %p78
      $region18: #{relu_conv_bn.1} parent=11 // pred_check_branch
        %145 = sbr.rel (%p143) target = $region20
      $region19: #{relu_conv_bn.1} parent=11 // pred_region
        _
      $region20: #{relu_conv_bn.1} parent=11 // pred_fallthru
        _
      // Predicated region
      $region21: #{relu_conv_bn.1} parent=11 // pred_check
        %p146 = pneg %p99
      $region22: #{relu_conv_bn.1} parent=11 // pred_check_branch
        %148 = sbr.rel (%p146) target = $region24
      $region23: #{relu_conv_bn.1} parent=11 // pred_region
        _
      $region24: #{relu_conv_bn.1} parent=11 // pred_fallthru
        _
    $region12: #{relu_conv_bn.1} parent=5 // pred_fallthru
      _
    %p149 = scmp.lt.s32.totalorder %s10, 4
    // Predicated region
    $region25: #{relu_conv_bn.1} parent=5 // pred_check
      %p150 = pneg %p149
    $region26: #{relu_conv_bn.1} parent=5 // pred_check_branch
      %152 = sbr.rel (%p150) target = $region28
    $region27: #{relu_conv_bn.1} parent=5 // pred_region
      // Predicated region
      $region29: #{relu_conv_bn.1} parent=27 // pred_check
        %p153 = pneg %p30
      $region30: #{relu_conv_bn.1} parent=27 // pred_check_branch
        %155 = sbr.rel (%p153) target = $region32
      $region31: #{relu_conv_bn.1} parent=27 // pred_region
        %p156 = scmp.lt.s32.totalorder %s10, 3
        %s157 = scalar_select %p156, %s10, 3
        %s158 = smul.addr %s157, 2
        %s159 = smul.addr %s158, 4
        %s160 = scalar_lea.vmem %s0, %s159
      $region32: #{relu_conv_bn.1} parent=27 // pred_fallthru
        _
    $region28: #{relu_conv_bn.1} parent=5 // pred_fallthru
      _
    %p161 = scmp.le.s32.totalorder 1, %s10
    %p162 = scmp.lt.s32.totalorder %s10, 5
    %p163 = pnand %p161, %p162
    %p164 = pneg %p163
    // Predicated region
    $region33: #{relu_conv_bn.1} parent=5 // pred_check
      _
    $region34: #{relu_conv_bn.1} parent=5 // pred_check_branch
      %166 = sbr.rel (%p163) target = $region36
    $region35: #{relu_conv_bn.1} parent=5 // pred_region
      %s167 = ssub.s32 %s10, 1
      %p168 = scmp.lt.s32.totalorder %s15, 3
      %s169 = scalar_select %p168, %s15, 3
      %s170 = smul.addr %s169, 2
      %s171 = smul.addr %s170, 4
      %s172 = scalar_lea.vmem %s0, %s171
      %p173 = pneg %p36
      %p174 = pneg %p33
      %p175 = pneg %p57
      %p176 = pneg %p54
      %p177 = pneg %p78
      %p178 = pneg %p75
      %p179 = pneg %p99
      %p180 = pneg %p96
      %p181 = pneg %p125
      %p182 = pneg %p122
      %p183 = scmp.lt.s32.totalorder %s15, 3
      %s184 = scalar_select %p183, %s15, 3
      %s185 = smul.addr %s184, 2
      %s186 = smul.addr %s185, 8
      %s187 = scalar_lea.vmem %s4, %s186
      %p188 = scmp.lt.s32.totalorder %s15, 3
      %s189 = scalar_select %p188, %s15, 3
      %s190 = smul.addr %s189, 2
      %s191 = smul.addr %s190, 4
      %s192 = scalar_lea.vmem %s0, %s191
      %p193 = scmp.lt.s32.totalorder %s15, 3
      %s194 = scalar_select %p193, %s15, 3
      %s195 = smul.addr %s194, 2
      %s196 = smul.addr %s195, 8
      %s197 = scalar_lea.vmem %s4, %s196
      %v199 = vld [vmem:[%s192] sm:$0xff]
      %v200 = vmax.f32 %v199, 0.0
      %v202 = vcombine.high %v200, %v200
      %v204 = vcombine.low %v200, %v200
      %205 = vrot.lane.b32.xlu0 %v204, 127
      %v206 = vpop.permute.xlu0 %205
      %207 = vrot.lane.b32.xlu0 %v200, 127
      %v208 = vpop.permute.xlu0 %207
      %vm209 = vcmask 1039360
      %v210 = vsel %vm209, %v206, %v208
      %213 = vrot.lane.b32.xlu0 %v200, 126
      %v214 = vpop.permute.xlu0 %213
      %215 = vrot.lane.b32.xlu0 %v202, 126
      %v216 = vpop.permute.xlu0 %215
      %vm217 = vcmask 1031168
      %v218 = vsel %vm217, %v214, %v216
      %221 = vrot.lane.b32.xlu0 %v204, 110
      %v222 = vpop.permute.xlu0 %221
      %223 = vrot.lane.b32.xlu0 %v200, 110
      %v224 = vpop.permute.xlu0 %223
      %vm225 = vcmask 900096
      %v226 = vsel %vm225, %v222, %v224
      %229 = vrot.lane.b32.xlu0 %v200, 109
      %v230 = vpop.permute.xlu0 %229
      %231 = vrot.lane.b32.xlu0 %v202, 109
      %v232 = vpop.permute.xlu0 %231
      %vm233 = vcmask 891904
      %v234 = vsel %vm233, %v230, %v232
      %237 = vrot.lane.b32.xlu0 %v204, 108
      %v238 = vpop.permute.xlu0 %237
      %239 = vrot.lane.b32.xlu0 %v200, 108
      %v240 = vpop.permute.xlu0 %239
      %vm241 = vcmask 883712
      %v242 = vsel %vm241, %v238, %v240
      %245 = vrot.lane.b32.xlu0 %v200, 92
      %v246 = vpop.permute.xlu0 %245
      %247 = vrot.lane.b32.xlu0 %v202, 92
      %v248 = vpop.permute.xlu0 %247
      %vm249 = vcmask 752640
      %v250 = vsel %vm249, %v246, %v248
      %253 = vrot.lane.b32.xlu0 %v204, 91
      %v254 = vpop.permute.xlu0 %253
      %255 = vrot.lane.b32.xlu0 %v200, 91
      %v256 = vpop.permute.xlu0 %255
      %vm257 = vcmask 744448
      %v258 = vsel %vm257, %v254, %v256
      %261 = vrot.lane.b32.xlu0 %v200, 90
      %v262 = vpop.permute.xlu0 %261
      %263 = vrot.lane.b32.xlu0 %v202, 90
      %v264 = vpop.permute.xlu0 %263
      %vm265 = vcmask 736256
      %v266 = vsel %vm265, %v262, %v264
      %vm269 = vcmask 1043456
      %v270 = vsel %vm269, %v200, %v210
      %v271 = vsel %vm269, %v202, %v208
      %v272 = vsel %vm269, %v218, %v226
      %v273 = vsel %vm269, %v216, %v224
      %v274 = vsel %vm269, %v234, %v242
      %v275 = vsel %vm269, %v232, %v240
      %v276 = vsel %vm269, %v250, %v258
      %v277 = vsel %vm269, %v248, %v256
      %v278 = vpack.c.bf16 %v272, %v270
      %v279 = vpack.c.bf16 %v273, %v271
      %v280 = vpack.c.bf16 %v276, %v274
      %v281 = vpack.c.bf16 %v277, %v275
      %v282 = vpack.c.bf16 %v266, %v266
      %v283 = vpack.c.bf16 %v264, %v264
      %v284 = vld [vmem:[%s1] sm:$0xf]
      %vm285 = vcmask 293888
      %v287 = vsel %vm285, %v284, 0
      %vm289 = vcmask 1041408
      %v291 = vsel %vm289, %v282, 0
      %v294 = vsel %vm289, %v283, 0
      %296 = vmatprep.subr.bf16.mxu0 0
      %297 = vmatpush1.bf16.msra.mxu0 0
      %298 = vmatprep.subr.bf16.mxu0 0
      %299 = vmatpush1.bf16.msra.mxu0 0
      %300 = vmatprep.subr.bf16.mxu0 0
      %301 = vmatpush1.bf16.msra.mxu0 0
      %302 = vmatprep.subr.bf16.mxu0 0
      %303 = vmatpush1.bf16.msra.mxu0 0
      %304 = vmatprep.subr.bf16.mxu0 0
      %305 = vmatpush1.bf16.msra.mxu0 0
      %306 = vmatprep.subr.bf16.mxu0 %v294
      %307 = vmatpush1.bf16.msra.mxu0 %v291
      %308 = vmatprep.subr.bf16.mxu0 %v281
      %309 = vmatpush1.bf16.msra.mxu0 %v280
      %310 = vmatprep.subr.bf16.mxu0 %v279
      %311 = vmatpush1.bf16.msra.mxu0 %v278
      %312 = vmatprep.subr.bf16.mxu0 0
      %313 = vmatpush2.bf16.msra.mxu0 0
      %314 = vmatprep.subr.bf16.mxu0 0
      %315 = vmatpush2.bf16.msra.mxu0 0
      %316 = vmatprep.subr.bf16.mxu0 0
      %317 = vmatpush2.bf16.msra.mxu0 0
      %318 = vmatprep.subr.bf16.mxu0 0
      %319 = vmatpush2.bf16.msra.mxu0 0
      %320 = vmatprep.subr.bf16.mxu0 0
      %321 = vmatpush2.bf16.msra.mxu0 0
      %322 = vmatprep.subr.bf16.mxu0 0
      %323 = vmatpush2.bf16.msra.mxu0 0
      %324 = vmatprep.subr.bf16.mxu0 0
      %325 = vmatpush2.bf16.msra.mxu0 0
      %326 = vmatprep.subr.bf16.mxu0 0
      %327 = vmatpush2.bf16.msra.mxu0 0
      %328 = vmatprep.mubr.bf16.mxu0 0
      %329 = vmatmul.mubr.bf16.gmra.mxu0 %v287
      %v330 = vpop.f32.mrf.mxu0
      %v331 = vadd.f32 0.0, %v330
      %v332 = vpop.f32.mrf.mxu0
      %v333 = vadd.f32 0.0, %v332
      %v334 = vpop.f32.mrf.mxu0
      %v335 = vpop.f32.mrf.mxu0
      %336 = vdwg.mxu0
      %v337 = vld [vmem:[%s2] sm:$0xff]
      %339 = vset.pattern.permute.xlu0 0
      %340 = vperm.xlu0 %339, %v337
      %v341 = vpop.permute.xlu0 %340
      %v343 = vmul.f32 %v331, %v341
      %v344 = vmul.f32 %v333, %v341
      %v345 = vld [vmem:[%s3] sm:$0xff]
      %347 = vset.pattern.permute.xlu0 0
      %348 = vperm.xlu0 %347, %v345
      %v349 = vpop.permute.xlu0 %348
      %v351 = vadd.f32 %v343, %v349
      %v352 = vadd.f32 %v344, %v349
      %353 = vst [vmem:[%s197] sm:$0xff] %v351
      %vm354 = vcmask 130048
      %355 = vst.msk [vmem:[%s197 + $0x8] sm:$0xff] %vm354, %v352
      %p356 = scmp.lt.s32.totalorder %s15, 3
      %s357 = scalar_select %p356, %s15, 3
      %s358 = smul.addr %s357, 2
      %s359 = smul.addr %s358, 8
      %s360 = scalar_lea.vmem %s4, %s359
      // Predicated region
      $region37: #{relu_conv_bn.1} parent=35 // pred_check
        %p361 = pneg %p122
      $region38: #{relu_conv_bn.1} parent=35 // pred_check_branch
        %363 = sbr.rel (%p361) target = $region40
      $region39: #{relu_conv_bn.1} parent=35 // pred_region
        _
      $region40: #{relu_conv_bn.1} parent=35 // pred_fallthru
        _
    $region36: #{relu_conv_bn.1} parent=5 // pred_fallthru
      _
    %p364 = scmp.le.s32.totalorder 2, %s10
    // Predicated region
    $region41: #{relu_conv_bn.1} parent=5 // pred_check
      %p365 = pneg %p364
    $region42: #{relu_conv_bn.1} parent=5 // pred_check_branch
      %367 = sbr.rel (%p365) target = $region44
    $region43: #{relu_conv_bn.1} parent=5 // pred_region
      %s368 = ssub.s32 %s10, 2
      // Predicated region
      $region45: #{relu_conv_bn.1} parent=43 // pred_check
        %p369 = pneg %p128
      $region46: #{relu_conv_bn.1} parent=43 // pred_check_branch
        %371 = sbr.rel (%p369) target = $region48
      $region47: #{relu_conv_bn.1} parent=43 // pred_region
        %p372 = scmp.lt.s32.totalorder %s16, 3
        %s373 = scalar_select %p372, %s16, 3
        %s374 = smul.addr %s373, 2
        %s375 = smul.addr %s374, 8
        %s376 = scalar_lea.vmem %s4, %s375
      $region48: #{relu_conv_bn.1} parent=43 // pred_fallthru
        _
    $region44: #{relu_conv_bn.1} parent=5 // pred_fallthru
      _
  $region6: #{relu_conv_bn.1} parent=0 // loop_footer
    %s14 = sadd.s32 1, %s10
  $region7: #{relu_conv_bn.1} parent=0 // loop_footer_branch
    %9 = sbr.rel target = $region3
  $region8: #{relu_conv_bn.1} parent=0 // loop_exit
    _

</llo_original>
